<compile_context>
chip_gen: v7x
topology: tpu7x:2x2x1
jax: 0.10.0
libtpu: 0.0.40
codegen_flags: <defaults>
</compile_context>

<pallas_src>
import math

import jax
import jax.numpy as jnp
from jax.experimental import pallas as pl
from jax.experimental.pallas import tpu as pltpu


# ~2 MiB per x/out block: measured >=85% of HBM roofline for streaming
# elementwise ops, while (x + out) double-buffered (~4x block) fits the
# default scoped VMEM on every generation (v5e 16 MiB, v6e/v7x 32 MiB) and
# leaves enough grid steps for v7x megacore sharding.
_TARGET_BLOCK_BYTES = 2 * 1024 * 1024
_MAX_LANE_TILE = 2048          # multiple of 128
_FULL_LANE_LIMIT = 4096        # use full lane extent below this


def _scale_kernel(x_ref, w_ref, o_ref):
    # Broadcasting multiply:
    #   channels_last : (tile_rows, tile_cols) * (1, tile_cols)
    #   channels_first: (tile_rows, tile_cols) * (tile_rows, 1)
    o_ref[...] = x_ref[...] * w_ref[...]


def _sublane_min(dtype) -> int:
    # Minimum second-to-last block dim: 8 (4-byte), 16 (2-byte), 32 (1-byte).
    return 32 // jnp.dtype(dtype).itemsize


def _lane_widen_factor(n_rows: int, n_chan: int, max_lane: int = 1024) -> int:
    """Largest k with n_rows % k == 0, (k*n_chan) % 128 == 0, k*n_chan <= max_lane.

    Reshaping (R, C) -> (R//k, k*C) makes the output lane-dense when C < 128
    (the single biggest measured lever for this memory-bound kernel).
    Falls back to k=1 (still correct, just lane-sparse stores).
    """
    if n_chan % 128 == 0:
        return 1
    k_hi = min(n_rows, max(1, max_lane // max(1, n_chan)))
    for k in range(k_hi, 0, -1):
        if n_rows % k == 0 and (k * n_chan) % 128 == 0:
            return k
    return 1


def _broadcast_scale(x2d, w2d, *, inplace: bool = False):
    """y = x2d * w2d where w2d is (1, L) (row-broadcast) or (R, 1) (col-broadcast)."""
    R, L = x2d.shape
    dt = jnp.dtype(x2d.dtype)
    sub_min = _sublane_min(dt)

    # Lane (column) tile: full extent when small (always legal), else a large
    # 128-multiple; ragged tails are handled by Pallas.
    tile_cols = L if L <= _FULL_LANE_LIMIT else _MAX_LANE_TILE

    # Row tile: multiple of sub_min sized for ~_TARGET_BLOCK_BYTES, or full extent.
    row_bytes = tile_cols * dt.itemsize
    t = max(1, _TARGET_BLOCK_BYTES // max(1, row_bytes))
    t = max(sub_min, (t // sub_min) * sub_min)
    tile_rows = R if t >= R else t

    w_rows, w_cols = w2d.shape
    wb_rows = 1 if w_rows == 1 else tile_rows
    wb_cols = 1 if w_cols == 1 else tile_cols

    def w_map(i, j):
        # Constant (0, 0) for the (1, L<=limit) case -> weight stays resident
        # in VMEM (no per-step re-DMA); otherwise follows only the tiny axis.
        return (0 if w_rows == 1 else i, 0 if w_cols == 1 else j)

    grid = (pl.cdiv(R, tile_rows), pl.cdiv(L, tile_cols))

    return pl.pallas_call(
        _scale_kernel,
        out_shape=jax.ShapeDtypeStruct((R, L), dt),
        grid_spec=pltpu.PrefetchScalarGridSpec(
            num_scalar_prefetch=0,
            grid=grid,
            in_specs=[
                pl.BlockSpec((tile_rows, tile_cols), lambda i, j: (i, j)),
                pl.BlockSpec((wb_rows, wb_cols), w_map),
            ],
            out_specs=pl.BlockSpec((tile_rows, tile_cols), lambda i, j: (i, j)),
        ),
        input_output_aliases={0: 0} if inplace else {},
        compiler_params=pltpu.CompilerParams(
            dimension_semantics=("parallel", "parallel")),
    )(x2d, w2d)


class LayerScale:
    """JAX/Pallas equivalent of the PyTorch LayerScale module.

    weight = ones(dim) * layer_scale_init_value (deterministic init).
    `inplace=True` is expressed via input_output_aliases (output values are
    identical either way under JAX's functional semantics).
    """

    def __init__(self, dim, layer_scale_init_value=1e-5, inplace=False,
                 data_format='channels_last', dtype=jnp.float32):
        assert data_format in ('channels_last', 'channels_first'), (
            "'data_format' could only be channels_last or channels_first.")
        self.dim = dim
        self.data_format = data_format
        self.inplace = inplace
        self.weight = jnp.ones((dim,), dtype=dtype) * layer_scale_init_value

    def __call__(self, x):
        # Cast weight to x.dtype so the in-kernel multiply is not promoted.
        w = self.weight.astype(x.dtype)

        if self.data_format == 'channels_first':
            # x: (B, C, H, W); y = x * weight.view(-1, 1, 1)
            B, C, H, W = x.shape
            assert C == self.dim
            R, HW = B * C, H * W
            x2d = x.reshape(R, HW)
            # Per-row scalar column (weight[c] for row b*C + c).  Its HBM/VMEM
            # cost is < x_bytes / tile_cols (negligible).
            # TODO(synk): a zero-copy SMEM scalar broadcast would need
            # per-channel blocks, which forces lane-sparse (H, W) tiles for
            # typical feature maps; the (R, 1) column is cheaper overall.
            w_col = jnp.tile(w, B).reshape(R, 1)
            y2d = _broadcast_scale(x2d, w_col, inplace=self.inplace)
            return y2d.reshape(B, C, H, W)

        # channels_last: x: (..., C); y = x * weight
        orig_shape = x.shape
        C = orig_shape[-1]
        assert C == self.dim
        R = math.prod(orig_shape[:-1]) if len(orig_shape) > 1 else 1
        k = _lane_widen_factor(R, C)
        L = k * C
        x2d = x.reshape(R // k, L)
        w_row = (jnp.tile(w, k) if k > 1 else w).reshape(1, L)
        y2d = _broadcast_scale(x2d, w_row, inplace=self.inplace)
        return y2d.reshape(orig_shape)


if __name__ == "__main__":
    key = jax.random.PRNGKey(0)
    k1, k2, k3 = jax.random.split(key, 3)

    # channels_last: (B, N, C) = (2, 8, 32)  -> lane-widened to (1, 512)
    x_last = jax.random.normal(k1, (2, 8, 32), dtype=jnp.float32)
    ls_last = LayerScale(dim=32, data_format='channels_last')
    y_last = jax.block_until_ready(ls_last(x_last))
    ref_last = x_last * ls_last.weight
    assert y_last.shape == x_last.shape
    assert jnp.allclose(y_last, ref_last, atol=1e-6), "channels_last mismatch"

    # channels_first: (B, C, H, W) = (2, 4, 16, 16)
    x_first = jax.random.normal(k2, (2, 4, 16, 16), dtype=jnp.float32)
    ls_first = LayerScale(dim=4, data_format='channels_first')
    y_first = jax.block_until_ready(ls_first(x_first))
    ref_first = x_first * ls_first.weight.reshape(-1, 1, 1)
    assert y_first.shape == x_first.shape
    assert jnp.allclose(y_first, ref_first, atol=1e-6), "channels_first mismatch"

    # channels_last where no lane-dense widening exists (fallback path): (2, 7, 24)
    x_odd = jax.random.normal(k3, (2, 7, 24), dtype=jnp.float32)
    ls_odd = LayerScale(dim=24, data_format='channels_last')
    y_odd = jax.block_until_ready(ls_odd(x_odd))
    ref_odd = x_odd * ls_odd.weight
    assert jnp.allclose(y_odd, ref_odd, atol=1e-6), "channels_last fallback mismatch"

    print("KERNEL_OK")
</pallas_src>

<mosaic_0001>
module attributes {stable_mosaic.version = 11 : i64} {
  func.func @_scale_kernel(%arg0: i32, %arg1: i32, %arg2: memref<1x512xf32, #tpu.memory_space<vmem>>, %arg3: memref<1x512xf32, #tpu.memory_space<vmem>>, %arg4: memref<1x512xf32, #tpu.memory_space<vmem>>) attributes {dimension_semantics = [#tpu.dimension_semantics<parallel>, #tpu.dimension_semantics<parallel>], iteration_bounds = array<i64: 1, 1>, scalar_prefetch = 0 : i64, scratch_operands = 0 : i64, tpu.core_type = #tpu.core_type<tc>, window_params = [{transform_indices = @transform_0, window_bounds = array<i64: 1, 512>}, {transform_indices = @transform_1, window_bounds = array<i64: 1, 512>}, {transform_indices = @transform_2, window_bounds = array<i64: 1, 512>}]} {
    %c0 = arith.constant 0 : index
    %c0_0 = arith.constant 0 : index
    %0 = vector.load %arg2[%c0, %c0_0] : memref<1x512xf32, #tpu.memory_space<vmem>>, vector<1x512xf32>
    %c0_1 = arith.constant 0 : index
    %c0_2 = arith.constant 0 : index
    %1 = vector.load %arg3[%c0_1, %c0_2] : memref<1x512xf32, #tpu.memory_space<vmem>>, vector<1x512xf32>
    %2 = arith.mulf %0, %1 : vector<1x512xf32>
    %c0_3 = arith.constant 0 : index
    %c0_4 = arith.constant 0 : index
    %3 = vector.load %arg4[%c0_3, %c0_4] : memref<1x512xf32, #tpu.memory_space<vmem>>, vector<1x512xf32>
    tpu.vector_store %arg4[%c0_3, %c0_4], %2 {strides = array<i32>} : memref<1x512xf32, #tpu.memory_space<vmem>>, vector<1x512xf32>,
    return
  }
  func.func @transform_0(%arg0: i32, %arg1: i32) -> (i32, i32) {
    %c0_i32 = arith.constant 0 : i32
    return %arg0, %arg1 : i32, i32
  }
  func.func @transform_1(%arg0: i32, %arg1: i32) -> (i32, i32) {
    %c0_i32 = arith.constant 0 : i32
    %c0_i32_0 = arith.constant 0 : i32
    return %c0_i32, %arg1 : i32, i32
  }
  func.func @transform_2(%arg0: i32, %arg1: i32) -> (i32, i32) {
    %c0_i32 = arith.constant 0 : i32
    return %arg0, %arg1 : i32, i32
  }
}

</mosaic_0001>

<llo_original>
// kernel: tpu_custom_call.1
$region0: #{tpu_custom_call.1}
  #allocation0 [shape = 'u32[]', space=smem, size = 0x4, offset = 0x4, fixed_abs, tag = 'smem constant byte address 0x4 - core index']
  #allocation1 [shape = 'u32[144,128]{1,0:T(1,128)}', space=vmem, size = 0x12000, scoped, tag = 'internal scratch']
  %s0 = inlined_call_operand.hbm [shape: f32[1,512], index: 0, kind: input, shape index: {}]
  %s1 = inlined_call_operand.hbm [shape: f32[1,512], index: 1, kind: input, shape index: {}]
  %s2 = inlined_call_operand.hbm [shape: f32[1,512], index: 2, kind: output, shape index: {}]
  %s3 = sld [smem:[#allocation0]]
  $region26: #{tpu_custom_call.1} parent=0
    _
  %s5 = ssub.s32 1, %s3
  %s6 = scalar_select 0, %s5, %s3
  $region1: #{tpu_custom_call.1} parent=0
    #allocation2 [shape = 'u8[2048]{0}', space=vmem, size = 0x800, scoped, tag = 'input window, operand 0, single buffered']
    #allocation3 [shape = 's32[1]{0}', space=sflag, size = 0x4, scoped, tag = 'scoped memory for tpu_custom_call.1']
    #allocation4 [shape = 's32[1]{0}', space=sflag, size = 0x4, scoped, tag = 'scoped memory for tpu_custom_call.1']
    #allocation5 [shape = 'u8[2048]{0}', space=vmem, size = 0x800, scoped, tag = 'input window, operand 1, single buffered']
    #allocation6 [shape = 's32[1]{0}', space=sflag, size = 0x4, scoped, tag = 'scoped memory for tpu_custom_call.1']
    #allocation7 [shape = 'u8[2048]{0}', space=vmem, size = 0x800, scoped, tag = 'output window, operand 0, single buffered']
    %7 = vsyncpa [#allocation3], 0
    %8 = vsyncpa [#allocation6], 0
    %9 = vsyncpa [#allocation4], 0
    // Predicated region
    $region2: #{tpu_custom_call.1} parent=1 // pred_check
      _
    $region3: #{tpu_custom_call.1} parent=1 // pred_check_branch
      %11 = sbr.rel (0) target = $region5
    $region4: #{tpu_custom_call.1} parent=1 // pred_region
      %s13 = ssub.s32 64, 64
      %14 = vsyncadd [#allocation3], %s13
      %s16 = sshll.u32 [#allocation2], 4
      %s17 = int_to_ptr.vmem [resolvable:$true] %s16
      %19 = dma.hbm_to_vmem [thread:$0]  %s0, 64, %s17, [#allocation3]
    $region5: #{tpu_custom_call.1} parent=1 // pred_fallthru
      _
    // Predicated region
    $region6: #{tpu_custom_call.1} parent=1 // pred_check
      _
    $region7: #{tpu_custom_call.1} parent=1 // pred_check_branch
      %21 = sbr.rel (0) target = $region9
    $region8: #{tpu_custom_call.1} parent=1 // pred_region
      %s23 = ssub.s32 64, 64
      %24 = vsyncadd [#allocation6], %s23
      %s26 = sshll.u32 [#allocation5], 4
      %s27 = int_to_ptr.vmem [resolvable:$true] %s26
      %29 = dma.hbm_to_vmem [thread:$0]  %s1, 64, %s27, [#allocation6]
    $region9: #{tpu_custom_call.1} parent=1 // pred_fallthru
      _
    // Predicated region
    $region10: #{tpu_custom_call.1} parent=1 // pred_check
      _
    $region11: #{tpu_custom_call.1} parent=1 // pred_check_branch
      %31 = sbr.rel (0) target = $region13
    $region12: #{tpu_custom_call.1} parent=1 // pred_region
      %32 = dma.done [#allocation3], 64
    $region13: #{tpu_custom_call.1} parent=1 // pred_fallthru
      _
    // Predicated region
    $region14: #{tpu_custom_call.1} parent=1 // pred_check
      _
    $region15: #{tpu_custom_call.1} parent=1 // pred_check_branch
      %34 = sbr.rel (0) target = $region17
    $region16: #{tpu_custom_call.1} parent=1 // pred_region
      %35 = dma.done [#allocation6], 64
    $region17: #{tpu_custom_call.1} parent=1 // pred_fallthru
      _
    %v36 = vld [vmem:[#allocation2] sm:$0xf]
    %v37 = vld [vmem:[#allocation5] sm:$0xf]
    %v38 = vmul.f32 %v36, %v37
    %v39 = vlaneseq
    %vm40 = vcmp.ge.s32.totalorder %v39, 0
    %vm41 = vcmp.lt.s32.totalorder %v39, 512
    %vm42 = vmand %vm40, %vm41
    %43 = vst.msk [vmem:[#allocation7] sm:$0xf] %vm42, %v38
    // Predicated region
    $region18: #{tpu_custom_call.1} parent=1 // pred_check
      _
    $region19: #{tpu_custom_call.1} parent=1 // pred_check_branch
      %45 = sbr.rel (0) target = $region21
    $region20: #{tpu_custom_call.1} parent=1 // pred_region
      %s47 = ssub.s32 64, 64
      %48 = vsyncadd [#allocation4], %s47
      %s50 = sshll.u32 [#allocation7], 4
      %s51 = int_to_ptr.vmem [resolvable:$true] %s50
      %53 = dma.vmem_to_hbm [thread:$0]  %s51, 64, %s2, [#allocation4]
    $region21: #{tpu_custom_call.1} parent=1 // pred_fallthru
      _
    // Predicated region
    $region22: #{tpu_custom_call.1} parent=1 // pred_check
      _
    $region23: #{tpu_custom_call.1} parent=1 // pred_check_branch
      %55 = sbr.rel (0) target = $region25
    $region24: #{tpu_custom_call.1} parent=1 // pred_region
      %56 = dma.done [#allocation4], 64
    $region25: #{tpu_custom_call.1} parent=1 // pred_fallthru
      _
    %57 = vsyncpa [#allocation3], 1
    %58 = vsyncpa [#allocation6], 1
    %59 = vsyncpa [#allocation4], 1

</llo_original>
